<compile_context>
chip_gen: v7x
topology: tpu7x:2x2x1
jax: 0.10.0
libtpu: 0.0.40
codegen_flags: <defaults>
</compile_context>

<pallas_src>
import functools

import jax
import jax.numpy as jnp
from jax.experimental import pallas as pl
from jax.experimental.pallas import tpu as pltpu


def _round_up(x, m):
    return ((x + m - 1) // m) * m


def _pad_lanes(n):
    # 128 lanes for small dims (v5e-native, tiny heads); 256 for large dims
    # so v6e/v7x 2x256 MXU pushes are full-width.
    return _round_up(n, 128) if n <= 128 else _round_up(n, 256)


# ---------------------------------------------------------------------------
# Kernel 1: encoder = im2col GEMM + bias + ReLU, fused global-average-pool.
#           grid = (batch, spatial row blocks); GAP accumulates over blocks.
# ---------------------------------------------------------------------------
def _encoder_kernel(hw, inv_hw, p_ref, w_ref, b_ref, h_ref, acc_ref):
    # p_ref : (1, TM, K)     bf16 im2col patches (one spatial row block)
    # w_ref : (K, Coutp)     bf16 conv weights (im2col layout, Cout padded)
    # b_ref : (1, Coutp)     f32 conv bias (zero padded)
    # h_ref : (1, 1, Coutp)  f32 GAP output for this batch element
    # acc   : (1, Coutp)     f32 running (masked) spatial sum
    m = pl.program_id(1)
    tm = p_ref.shape[1]

    @pl.when(m == 0)
    def _init():
        acc_ref[...] = jnp.zeros_like(acc_ref)

    z = jnp.dot(p_ref[0], w_ref[...], preferred_element_type=jnp.float32)
    z = jnp.maximum(z + b_ref[...], 0.0)                 # bias + ReLU (f32)

    # Row-validity mask: padded spatial rows must not enter the GAP sum since
    # relu(0 + bias) != 0.  Fold the mask into the MXU row-reduction vector so
    # the reduction uses the (idle) matmul slot instead of VPU/XLU.
    row = m * tm + jax.lax.broadcasted_iota(jnp.int32, (1, tm), 1)
    mask = (row < hw).astype(jnp.bfloat16)               # (1, TM)
    acc_ref[...] += jnp.dot(mask, z.astype(jnp.bfloat16),
                            preferred_element_type=jnp.float32)

    @pl.when(m == pl.num_programs(1) - 1)
    def _finalize():
        h_ref[...] = (acc_ref[...] * inv_hw).reshape(1, 1, acc_ref.shape[-1])


def encoder_forward(x_nhwc, w_conv, b_conv):
    """Conv3x3(pad=1)+ReLU+GAP.  Returns (h, h_padded):
       h        : (B, Cout)   real GAP features (what the module returns)
       h_padded : (B, Coutp)  lane-padded features, fed straight to projector
    """
    B, H, W, Cin = x_nhwc.shape
    Cout = w_conv.shape[-1]
    K = 9 * Cin
    Coutp = _pad_lanes(Cout)
    HW = H * W

    # im2col in the wrapper, bf16, WITHOUT any K padding: K = 9*Cin stays the
    # full lane extent of the patch tensor (block dim == array dim), so the
    # streamed HBM bytes are B*HW*9*Cin*2 instead of the old 128-padded slab.
    xb = x_nhwc.astype(jnp.bfloat16)
    xp = jnp.pad(xb, ((0, 0), (1, 1), (1, 1), (0, 0)))
    cols = [xp[:, kh:kh + H, kw:kw + W, :] for kh in range(3) for kw in range(3)]
    patches = jnp.concatenate(cols, axis=-1).reshape(B, HW, K)

    # Fixed spatial tile + cdiv grid (padded rows masked in-kernel).
    TM = min(1024, _round_up(HW, 8))
    HWp = _round_up(HW, TM)
    n_m = HWp // TM
    if HWp != HW:
        patches = jnp.pad(patches, ((0, 0), (0, HWp - HW), (0, 0)))

    # (3,3,Cin,Cout) -> (9*Cin, Cout), same (kh, kw, cin) ordering as patches.
    w = jnp.pad(w_conv.reshape(K, Cout),
                ((0, 0), (0, Coutp - Cout))).astype(jnp.bfloat16)
    b = jnp.pad(b_conv.reshape(1, -1),
                ((0, 0), (0, Coutp - Cout))).astype(jnp.float32)

    h_pad = pl.pallas_call(
        functools.partial(_encoder_kernel, HW, 1.0 / float(HW)),
        out_shape=jax.ShapeDtypeStruct((B, 1, Coutp), jnp.float32),
        grid=(B, n_m),
        in_specs=[pl.BlockSpec((1, TM, K), lambda bi, mi: (bi, mi, 0)),
                  pl.BlockSpec((K, Coutp), lambda bi, mi: (0, 0)),
                  pl.BlockSpec((1, Coutp), lambda bi, mi: (0, 0))],
        out_specs=pl.BlockSpec((1, 1, Coutp), lambda bi, mi: (bi, 0, 0)),
        scratch_shapes=[pltpu.VMEM((1, Coutp), jnp.float32)],
        compiler_params=pltpu.CompilerParams(
            dimension_semantics=("parallel", "arbitrary"),
            vmem_limit_bytes=32 * 1024 * 1024),
    )(patches, w, b)

    h_pad = h_pad[:, 0, :]              # (B, Coutp); padded channels exactly 0
    return h_pad[:, :Cout], h_pad


# ---------------------------------------------------------------------------
# Kernel 2: TwoLayerLinearHead = Linear -> BatchNorm1d(train) -> ReLU -> Linear
#           Single fused step when the weights fit VMEM (n_kb == 1); otherwise
#           hidden-column blocks with a VMEM accumulator for the K-reduction
#           of the second matmul (BN is per-feature, so blocks are independent).
# ---------------------------------------------------------------------------
def _projector_kernel(h_ref, w1_ref, b1_ref, g_ref, bt_ref, w2_ref, b2_ref,
                      p_ref, acc_ref):
    k = pl.program_id(0)

    @pl.when(k == 0)
    def _init():
        acc_ref[...] = jnp.zeros_like(acc_ref)

    z = jnp.dot(h_ref[...], w1_ref[...], preferred_element_type=jnp.float32)
    z = z + b1_ref[...]
    # BatchNorm1d, training-mode batch statistics (biased variance), eps=1e-5.
    mean = jnp.mean(z, axis=0, keepdims=True)
    var = jnp.mean((z - mean) * (z - mean), axis=0, keepdims=True)
    zn = (z - mean) * jax.lax.rsqrt(var + 1e-5)
    a = jnp.maximum(zn * g_ref[...] + bt_ref[...], 0.0)       # ReLU (f32)
    acc_ref[...] += jnp.dot(a.astype(w2_ref.dtype), w2_ref[...],
                            preferred_element_type=jnp.float32)

    @pl.when(k == pl.num_programs(0) - 1)
    def _finalize():
        p_ref[...] = acc_ref[...] + b2_ref[...]


def projector_forward(h_pad, w1, b1, gamma, beta, w2, b2):
    B, Cmidp = h_pad.shape
    Cmid, Dhid = w1.shape
    Dout = w2.shape[1]
    Doutp = _pad_lanes(Dout)
    Dhidp = _round_up(Dhid, 128)

    # Single fused step whenever the (double-buffered) bf16 weight slabs plus
    # resident activations fit a conservative 24 MiB budget (true for typical
    # projection heads even on v7x's 32 MiB scoped VMEM); otherwise fall back
    # to 512-wide hidden-column blocks.
    weight_bytes = 2 * 2 * (Cmidp * Dhidp + Dhidp * Doutp)     # 2 bufs, bf16
    act_bytes = 4 * B * (Cmidp + 2 * Doutp)
    if weight_bytes + act_bytes < 24 * 1024 * 1024:
        TN = Dhidp
    else:
        TN = 512
        Dhidp = _round_up(Dhid, TN)
    n_kb = Dhidp // TN

    # Zero-padded, lane-dense parameter slabs.  Padded hidden columns stay
    # exactly 0 through BN/ReLU, so they do not affect the result.
    w1p = jnp.pad(w1, ((0, Cmidp - Cmid), (0, Dhidp - Dhid))).astype(jnp.bfloat16)
    b1p = jnp.pad(b1.reshape(1, -1), ((0, 0), (0, Dhidp - Dhid))).astype(jnp.float32)
    gp = jnp.pad(gamma.reshape(1, -1), ((0, 0), (0, Dhidp - Dhid))).astype(jnp.float32)
    btp = jnp.pad(beta.reshape(1, -1), ((0, 0), (0, Dhidp - Dhid))).astype(jnp.float32)
    w2p = jnp.pad(w2, ((0, Dhidp - Dhid), (0, Doutp - Dout))).astype(jnp.bfloat16)
    b2p = jnp.pad(b2.reshape(1, -1), ((0, 0), (0, Doutp - Dout))).astype(jnp.float32)
    h_bf = h_pad.astype(jnp.bfloat16)

    cost = pl.CostEstimate(
        flops=2 * B * Cmidp * Dhidp + 2 * B * Dhidp * Doutp,
        transcendentals=Dhidp,
        bytes_accessed=(2 * (B * Cmidp + Cmidp * Dhidp + Dhidp * Doutp)
                        + 4 * (3 * Dhidp + Doutp + B * Doutp)))

    p_pad = pl.pallas_call(
        _projector_kernel,
        out_shape=jax.ShapeDtypeStruct((B, Doutp), jnp.float32),
        grid=(n_kb,),
        in_specs=[pl.BlockSpec((B, Cmidp), lambda k: (0, 0)),
                  pl.BlockSpec((Cmidp, TN), lambda k: (0, k)),
                  pl.BlockSpec((1, TN), lambda k: (0, k)),
                  pl.BlockSpec((1, TN), lambda k: (0, k)),
                  pl.BlockSpec((1, TN), lambda k: (0, k)),
                  pl.BlockSpec((TN, Doutp), lambda k: (k, 0)),
                  pl.BlockSpec((1, Doutp), lambda k: (0, 0))],
        out_specs=pl.BlockSpec((B, Doutp), lambda k: (0, 0)),
        scratch_shapes=[pltpu.VMEM((B, Doutp), jnp.float32)],
        compiler_params=pltpu.CompilerParams(
            dimension_semantics=("arbitrary",),
            vmem_limit_bytes=32 * 1024 * 1024),
        cost_estimate=cost,
    )(h_bf, w1p, b1p, gp, btp, w2p, b2p)
    return p_pad[:, :Dout]


# ---------------------------------------------------------------------------
# Backbone forward (scrl_enabled=False path): returns (p, h)
# ---------------------------------------------------------------------------
def backbone_forward(x_nchw, params):
    x = jnp.transpose(x_nchw, (0, 2, 3, 1))                   # NCHW -> NHWC
    h, h_pad = encoder_forward(x, params["w_conv"], params["b_conv"])
    p = projector_forward(h_pad, params["w1"], params["b1"], params["gamma"],
                          params["beta"], params["w2"], params["b2"])
    return p, h


if __name__ == "__main__":
    # small, deterministic shapes
    B, Cin, H, W = 2, 4, 16, 16
    Cmid = 32            # encoder output channels
    Dhid, Dout = 64, 16  # projector hidden / output dims

    key = jax.random.PRNGKey(0)
    k_x, k_wc, k_bc, k_w1, k_b1, k_w2, k_b2 = jax.random.split(key, 7)

    x = jax.random.normal(k_x, (B, Cin, H, W), jnp.float32)   # NCHW like PyTorch

    params = {
        "w_conv": jax.random.normal(k_wc, (3, 3, Cin, Cmid), jnp.float32) * 0.1,
        "b_conv": jax.random.normal(k_bc, (1, Cmid), jnp.float32) * 0.1,
        "w1": jax.random.normal(k_w1, (Cmid, Dhid), jnp.float32) * 0.1,
        "b1": jax.random.normal(k_b1, (1, Dhid), jnp.float32) * 0.1,
        "gamma": jnp.ones((1, Dhid), jnp.float32),
        "beta": jnp.zeros((1, Dhid), jnp.float32),
        "w2": jax.random.normal(k_w2, (Dhid, Dout), jnp.float32) * 0.1,
        "b2": jax.random.normal(k_b2, (1, Dout), jnp.float32) * 0.1,
    }

    p, h = jax.jit(backbone_forward)(x, params)
    jax.block_until_ready((p, h))
    assert p.shape == (B, Dout) and h.shape == (B, Cmid)
    print("KERNEL_OK")
</pallas_src>

<mosaic_0001>
module attributes {stable_mosaic.version = 11 : i64} {
  func.func @_encoder_kernel(%arg0: i32, %arg1: i32, %arg2: memref<1x256x36xbf16, #tpu.memory_space<vmem>>, %arg3: memref<36x128xbf16, #tpu.memory_space<vmem>>, %arg4: memref<1x128xf32, #tpu.memory_space<vmem>>, %arg5: memref<1x1x128xf32, #tpu.memory_space<vmem>>, %arg6: memref<1x128xf32, #tpu.memory_space<vmem>>) attributes {dimension_semantics = [#tpu.dimension_semantics<parallel>, #tpu.dimension_semantics<arbitrary>], iteration_bounds = array<i64: 2, 1>, scalar_prefetch = 0 : i64, scratch_operands = 1 : i64, tpu.core_type = #tpu.core_type<tc>, window_params = [{transform_indices = @transform_0, window_bounds = array<i64: 1, 256, 36>}, {pipeline_mode = #tpu.pipeline_mode<synchronous>, transform_indices = @transform_1, window_bounds = array<i64: 36, 128>}, {pipeline_mode = #tpu.pipeline_mode<synchronous>, transform_indices = @transform_2, window_bounds = array<i64: 1, 128>}, {transform_indices = @transform_3, window_bounds = array<i64: 1, 1, 128>}]} {
    %c0_i32 = arith.constant 0 : i32
    %0 = arith.cmpi eq, %arg1, %c0_i32 : i32
    %1 = arith.extui %0 : i1 to i32
    %c0_i32_0 = arith.constant 0 : i32
    %2 = arith.cmpi ne, %1, %c0_i32_0 : i32
    scf.if %2 {
      %cst_16 = arith.constant 0.000000e+00 : f32
      %29 = vector.broadcast %cst_16 : f32 to vector<1x128xf32>
      %c0_17 = arith.constant 0 : index
      %c0_18 = arith.constant 0 : index
      %30 = vector.load %arg6[%c0_17, %c0_18] : memref<1x128xf32, #tpu.memory_space<vmem>>, vector<1x128xf32>
      tpu.vector_store %arg6[%c0_17, %c0_18], %29 {strides = array<i32>} : memref<1x128xf32, #tpu.memory_space<vmem>>, vector<1x128xf32>,
    } else {
    }
    %c0 = arith.constant 0 : index
    %c0_1 = arith.constant 0 : index
    %c0_2 = arith.constant 0 : index
    %3 = vector.load %arg2[%c0, %c0_1, %c0_2] : memref<1x256x36xbf16, #tpu.memory_space<vmem>>, vector<1x256x36xbf16>
    %4 = vector.shape_cast %3 : vector<1x256x36xbf16> to vector<256x36xbf16>
    %c0_3 = arith.constant 0 : index
    %c0_4 = arith.constant 0 : index
    %5 = vector.load %arg3[%c0_3, %c0_4] : memref<36x128xbf16, #tpu.memory_space<vmem>>, vector<36x128xbf16>
    %cst = arith.constant dense<0.000000e+00> : vector<256x128xf32>
    %6 = tpu.matmul %4, %5, %cst {dimension_numbers = #tpu.dot_dimension_numbers<[1], [0], [0], [1], [0, 0, 1, 1], [], []>} : vector<256x36xbf16>, vector<36x128xbf16>, vector<256x128xf32> -> vector<256x128xf32>
    %c0_5 = arith.constant 0 : index
    %c0_6 = arith.constant 0 : index
    %7 = vector.load %arg4[%c0_5, %c0_6] : memref<1x128xf32, #tpu.memory_space<vmem>>, vector<1x128xf32>
    %8 = vector.broadcast %7 : vector<1x128xf32> to vector<256x128xf32>
    %9 = arith.addf %6, %8 : vector<256x128xf32>
    %cst_7 = arith.constant 0.000000e+00 : f32
    %10 = vector.broadcast %cst_7 : f32 to vector<256x128xf32>
    %11 = arith.maximumf %9, %10 : vector<256x128xf32>
    %c256_i32 = arith.constant 256 : i32
    %12 = arith.muli %arg1, %c256_i32 : i32
    %13 = tpu.iota {dimensions = array<i32: 1>} : vector<1x256xi32>
    %14 = vector.broadcast %12 : i32 to vector<1x256xi32>
    %15 = arith.addi %14, %13 : vector<1x256xi32>
    %c256_i32_8 = arith.constant 256 : i32
    %16 = vector.broadcast %c256_i32_8 : i32 to vector<1x256xi32>
    %17 = arith.cmpi slt, %15, %16 : vector<1x256xi32>
    %18 = arith.extui %17 : vector<1x256xi1> to vector<1x256xi32>
    %19 = arith.sitofp %18 : vector<1x256xi32> to vector<1x256xf32>
    %20 = arith.truncf %19 : vector<1x256xf32> to vector<1x256xbf16>
    %c0_9 = arith.constant 0 : index
    %c0_10 = arith.constant 0 : index
    %21 = vector.load %arg6[%c0_9, %c0_10] : memref<1x128xf32, #tpu.memory_space<vmem>>, vector<1x128xf32>
    %22 = arith.truncf %11 : vector<256x128xf32> to vector<256x128xbf16>
    %cst_11 = arith.constant dense<0.000000e+00> : vector<1x128xf32>
    %23 = tpu.matmul %20, %22, %cst_11 {dimension_numbers = #tpu.dot_dimension_numbers<[1], [0], [0], [1], [0, 0, 1, 1], [], []>} : vector<1x256xbf16>, vector<256x128xbf16>, vector<1x128xf32> -> vector<1x128xf32>
    %24 = arith.addf %21, %23 : vector<1x128xf32>
    %c0_12 = arith.constant 0 : index
    %c0_13 = arith.constant 0 : index
    %25 = vector.load %arg6[%c0_12, %c0_13] : memref<1x128xf32, #tpu.memory_space<vmem>>, vector<1x128xf32>
    tpu.vector_store %arg6[%c0_12, %c0_13], %24 {strides = array<i32>} : memref<1x128xf32, #tpu.memory_space<vmem>>, vector<1x128xf32>,
    %c0_i32_14 = arith.constant 0 : i32
    %26 = arith.cmpi eq, %arg1, %c0_i32_14 : i32
    %27 = arith.extui %26 : i1 to i32
    %c0_i32_15 = arith.constant 0 : i32
    %28 = arith.cmpi ne, %27, %c0_i32_15 : i32
    scf.if %28 {
      %c0_16 = arith.constant 0 : index
      %c0_17 = arith.constant 0 : index
      %29 = vector.load %arg6[%c0_16, %c0_17] : memref<1x128xf32, #tpu.memory_space<vmem>>, vector<1x128xf32>
      %cst_18 = arith.constant 3.906250e-03 : f32
      %30 = vector.broadcast %cst_18 : f32 to vector<1x128xf32>
      %31 = arith.mulf %29, %30 : vector<1x128xf32>
      %32 = vector.shape_cast %31 : vector<1x128xf32> to vector<1x1x128xf32>
      %c0_19 = arith.constant 0 : index
      %c0_20 = arith.constant 0 : index
      %c0_21 = arith.constant 0 : index
      %33 = vector.load %arg5[%c0_19, %c0_20, %c0_21] : memref<1x1x128xf32, #tpu.memory_space<vmem>>, vector<1x1x128xf32>
      tpu.vector_store %arg5[%c0_19, %c0_20, %c0_21], %32 {strides = array<i32>} : memref<1x1x128xf32, #tpu.memory_space<vmem>>, vector<1x1x128xf32>,
    } else {
    }
    return
  }
  func.func @transform_0(%arg0: i32, %arg1: i32) -> (i32, i32, i32) {
    %c0_i32 = arith.constant 0 : i32
    %c0_i32_0 = arith.constant 0 : i32
    return %arg0, %arg1, %c0_i32 : i32, i32, i32
  }
  func.func @transform_1(%arg0: i32, %arg1: i32) -> (i32, i32) {
    %c0_i32 = arith.constant 0 : i32
    %c0_i32_0 = arith.constant 0 : i32
    %c0_i32_1 = arith.constant 0 : i32
    return %c0_i32, %c0_i32_0 : i32, i32
  }
  func.func @transform_2(%arg0: i32, %arg1: i32) -> (i32, i32) {
    %c0_i32 = arith.constant 0 : i32
    %c0_i32_0 = arith.constant 0 : i32
    %c0_i32_1 = arith.constant 0 : i32
    return %c0_i32, %c0_i32_0 : i32, i32
  }
  func.func @transform_3(%arg0: i32, %arg1: i32) -> (i32, i32, i32) {
    %c0_i32 = arith.constant 0 : i32
    %c0_i32_0 = arith.constant 0 : i32
    %c0_i32_1 = arith.constant 0 : i32
    return %arg0, %c0_i32, %c0_i32_0 : i32, i32, i32
  }
}

module attributes {stable_mosaic.version = 11 : i64} {
  func.func @_projector_kernel(%arg0: i32, %arg1: memref<2x128xbf16, #tpu.memory_space<vmem>>, %arg2: memref<128x128xbf16, #tpu.memory_space<vmem>>, %arg3: memref<1x128xf32, #tpu.memory_space<vmem>>, %arg4: memref<1x128xf32, #tpu.memory_space<vmem>>, %arg5: memref<1x128xf32, #tpu.memory_space<vmem>>, %arg6: memref<128x128xbf16, #tpu.memory_space<vmem>>, %arg7: memref<1x128xf32, #tpu.memory_space<vmem>>, %arg8: memref<2x128xf32, #tpu.memory_space<vmem>>, %arg9: memref<2x128xf32, #tpu.memory_space<vmem>>) attributes {dimension_semantics = [#tpu.dimension_semantics<arbitrary>], iteration_bounds = array<i64: 1>, scalar_prefetch = 0 : i64, scratch_operands = 1 : i64, tpu.core_type = #tpu.core_type<tc>, window_params = [{pipeline_mode = #tpu.pipeline_mode<synchronous>, transform_indices = @transform_0, window_bounds = array<i64: 2, 128>}, {transform_indices = @transform_1, window_bounds = array<i64: 128, 128>}, {transform_indices = @transform_2, window_bounds = array<i64: 1, 128>}, {transform_indices = @transform_3, window_bounds = array<i64: 1, 128>}, {transform_indices = @transform_4, window_bounds = array<i64: 1, 128>}, {transform_indices = @transform_5, window_bounds = array<i64: 128, 128>}, {pipeline_mode = #tpu.pipeline_mode<synchronous>, transform_indices = @transform_6, window_bounds = array<i64: 1, 128>}, {pipeline_mode = #tpu.pipeline_mode<synchronous>, transform_indices = @transform_7, window_bounds = array<i64: 2, 128>}]} {
    %c0_i32 = arith.constant 0 : i32
    %0 = arith.cmpi eq, %arg0, %c0_i32 : i32
    %1 = arith.extui %0 : i1 to i32
    %c0_i32_0 = arith.constant 0 : i32
    %2 = arith.cmpi ne, %1, %c0_i32_0 : i32
    scf.if %2 {
      %cst_25 = arith.constant 0.000000e+00 : f32
      %46 = vector.broadcast %cst_25 : f32 to vector<2x128xf32>
      %c0_26 = arith.constant 0 : index
      %c0_27 = arith.constant 0 : index
      %47 = vector.load %arg9[%c0_26, %c0_27] : memref<2x128xf32, #tpu.memory_space<vmem>>, vector<2x128xf32>
      tpu.vector_store %arg9[%c0_26, %c0_27], %46 {strides = array<i32>} : memref<2x128xf32, #tpu.memory_space<vmem>>, vector<2x128xf32>,
    } else {
    }
    %c0 = arith.constant 0 : index
    %c0_1 = arith.constant 0 : index
    %3 = vector.load %arg1[%c0, %c0_1] : memref<2x128xbf16, #tpu.memory_space<vmem>>, vector<2x128xbf16>
    %c0_2 = arith.constant 0 : index
    %c0_3 = arith.constant 0 : index
    %4 = vector.load %arg2[%c0_2, %c0_3] : memref<128x128xbf16, #tpu.memory_space<vmem>>, vector<128x128xbf16>
    %cst = arith.constant dense<0.000000e+00> : vector<2x128xf32>
    %5 = tpu.matmul %3, %4, %cst {dimension_numbers = #tpu.dot_dimension_numbers<[1], [0], [0], [1], [0, 0, 1, 1], [], []>} : vector<2x128xbf16>, vector<128x128xbf16>, vector<2x128xf32> -> vector<2x128xf32>
    %c0_4 = arith.constant 0 : index
    %c0_5 = arith.constant 0 : index
    %6 = vector.load %arg3[%c0_4, %c0_5] : memref<1x128xf32, #tpu.memory_space<vmem>>, vector<1x128xf32>
    %7 = vector.broadcast %6 : vector<1x128xf32> to vector<2x128xf32>
    %8 = arith.addf %5, %7 : vector<2x128xf32>
    %cst_6 = arith.constant dense<0.000000e+00> : vector<128xf32>
    %9 = vector.multi_reduction <add>, %8, %cst_6 [0] : vector<2x128xf32> to vector<128xf32>
    %10 = vector.shape_cast %9 : vector<128xf32> to vector<1x128xf32>
    %cst_7 = arith.constant 2.000000e+00 : f32
    %11 = vector.broadcast %cst_7 : f32 to vector<1x128xf32>
    %12 = arith.divf %10, %11 : vector<1x128xf32>
    %13 = vector.broadcast %12 : vector<1x128xf32> to vector<2x128xf32>
    %14 = arith.subf %8, %13 : vector<2x128xf32>
    %15 = vector.broadcast %12 : vector<1x128xf32> to vector<2x128xf32>
    %16 = arith.subf %8, %15 : vector<2x128xf32>
    %17 = arith.mulf %14, %16 : vector<2x128xf32>
    %cst_8 = arith.constant dense<0.000000e+00> : vector<128xf32>
    %18 = vector.multi_reduction <add>, %17, %cst_8 [0] : vector<2x128xf32> to vector<128xf32>
    %19 = vector.shape_cast %18 : vector<128xf32> to vector<1x128xf32>
    %cst_9 = arith.constant 2.000000e+00 : f32
    %20 = vector.broadcast %cst_9 : f32 to vector<1x128xf32>
    %21 = arith.divf %19, %20 : vector<1x128xf32>
    %22 = vector.broadcast %12 : vector<1x128xf32> to vector<2x128xf32>
    %23 = arith.subf %8, %22 : vector<2x128xf32>
    %cst_10 = arith.constant 9.99999974E-6 : f32
    %24 = vector.broadcast %cst_10 : f32 to vector<1x128xf32>
    %25 = arith.addf %21, %24 : vector<1x128xf32>
    %26 = math.rsqrt %25 : vector<1x128xf32>
    %27 = vector.broadcast %26 : vector<1x128xf32> to vector<2x128xf32>
    %28 = arith.mulf %23, %27 : vector<2x128xf32>
    %c0_11 = arith.constant 0 : index
    %c0_12 = arith.constant 0 : index
    %29 = vector.load %arg4[%c0_11, %c0_12] : memref<1x128xf32, #tpu.memory_space<vmem>>, vector<1x128xf32>
    %30 = vector.broadcast %29 : vector<1x128xf32> to vector<2x128xf32>
    %31 = arith.mulf %28, %30 : vector<2x128xf32>
    %c0_13 = arith.constant 0 : index
    %c0_14 = arith.constant 0 : index
    %32 = vector.load %arg5[%c0_13, %c0_14] : memref<1x128xf32, #tpu.memory_space<vmem>>, vector<1x128xf32>
    %33 = vector.broadcast %32 : vector<1x128xf32> to vector<2x128xf32>
    %34 = arith.addf %31, %33 : vector<2x128xf32>
    %cst_15 = arith.constant 0.000000e+00 : f32
    %35 = vector.broadcast %cst_15 : f32 to vector<2x128xf32>
    %36 = arith.maximumf %34, %35 : vector<2x128xf32>
    %c0_16 = arith.constant 0 : index
    %c0_17 = arith.constant 0 : index
    %37 = vector.load %arg9[%c0_16, %c0_17] : memref<2x128xf32, #tpu.memory_space<vmem>>, vector<2x128xf32>
    %38 = arith.truncf %36 : vector<2x128xf32> to vector<2x128xbf16>
    %c0_18 = arith.constant 0 : index
    %c0_19 = arith.constant 0 : index
    %39 = vector.load %arg6[%c0_18, %c0_19] : memref<128x128xbf16, #tpu.memory_space<vmem>>, vector<128x128xbf16>
    %cst_20 = arith.constant dense<0.000000e+00> : vector<2x128xf32>
    %40 = tpu.matmul %38, %39, %cst_20 {dimension_numbers = #tpu.dot_dimension_numbers<[1], [0], [0], [1], [0, 0, 1, 1], [], []>} : vector<2x128xbf16>, vector<128x128xbf16>, vector<2x128xf32> -> vector<2x128xf32>
    %41 = arith.addf %37, %40 : vector<2x128xf32>
    %c0_21 = arith.constant 0 : index
    %c0_22 = arith.constant 0 : index
    %42 = vector.load %arg9[%c0_21, %c0_22] : memref<2x128xf32, #tpu.memory_space<vmem>>, vector<2x128xf32>
    tpu.vector_store %arg9[%c0_21, %c0_22], %41 {strides = array<i32>} : memref<2x128xf32, #tpu.memory_space<vmem>>, vector<2x128xf32>,
    %c0_i32_23 = arith.constant 0 : i32
    %43 = arith.cmpi eq, %arg0, %c0_i32_23 : i32
    %44 = arith.extui %43 : i1 to i32
    %c0_i32_24 = arith.constant 0 : i32
    %45 = arith.cmpi ne, %44, %c0_i32_24 : i32
    scf.if %45 {
      %c0_25 = arith.constant 0 : index
      %c0_26 = arith.constant 0 : index
      %46 = vector.load %arg9[%c0_25, %c0_26] : memref<2x128xf32, #tpu.memory_space<vmem>>, vector<2x128xf32>
      %c0_27 = arith.constant 0 : index
      %c0_28 = arith.constant 0 : index
      %47 = vector.load %arg7[%c0_27, %c0_28] : memref<1x128xf32, #tpu.memory_space<vmem>>, vector<1x128xf32>
      %48 = vector.broadcast %47 : vector<1x128xf32> to vector<2x128xf32>
      %49 = arith.addf %46, %48 : vector<2x128xf32>
      %c0_29 = arith.constant 0 : index
      %c0_30 = arith.constant 0 : index
      %50 = vector.load %arg8[%c0_29, %c0_30] : memref<2x128xf32, #tpu.memory_space<vmem>>, vector<2x128xf32>
      tpu.vector_store %arg8[%c0_29, %c0_30], %49 {strides = array<i32>} : memref<2x128xf32, #tpu.memory_space<vmem>>, vector<2x128xf32>,
    } else {
    }
    return
  }
  func.func @transform_0(%arg0: i32) -> (i32, i32) {
    %c0_i32 = arith.constant 0 : i32
    %c0_i32_0 = arith.constant 0 : i32
    %c0_i32_1 = arith.constant 0 : i32
    return %c0_i32, %c0_i32_0 : i32, i32
  }
  func.func @transform_1(%arg0: i32) -> (i32, i32) {
    %c0_i32 = arith.constant 0 : i32
    %c0_i32_0 = arith.constant 0 : i32
    return %c0_i32, %arg0 : i32, i32
  }
  func.func @transform_2(%arg0: i32) -> (i32, i32) {
    %c0_i32 = arith.constant 0 : i32
    %c0_i32_0 = arith.constant 0 : i32
    return %c0_i32, %arg0 : i32, i32
  }
  func.func @transform_3(%arg0: i32) -> (i32, i32) {
    %c0_i32 = arith.constant 0 : i32
    %c0_i32_0 = arith.constant 0 : i32
    return %c0_i32, %arg0 : i32, i32
  }
  func.func @transform_4(%arg0: i32) -> (i32, i32) {
    %c0_i32 = arith.constant 0 : i32
    %c0_i32_0 = arith.constant 0 : i32
    return %c0_i32, %arg0 : i32, i32
  }
  func.func @transform_5(%arg0: i32) -> (i32, i32) {
    %c0_i32 = arith.constant 0 : i32
    %c0_i32_0 = arith.constant 0 : i32
    return %arg0, %c0_i32 : i32, i32
  }
  func.func @transform_6(%arg0: i32) -> (i32, i32) {
    %c0_i32 = arith.constant 0 : i32
    %c0_i32_0 = arith.constant 0 : i32
    %c0_i32_1 = arith.constant 0 : i32
    return %c0_i32, %c0_i32_0 : i32, i32
  }
  func.func @transform_7(%arg0: i32) -> (i32, i32) {
    %c0_i32 = arith.constant 0 : i32
    %c0_i32_0 = arith.constant 0 : i32
    %c0_i32_1 = arith.constant 0 : i32
    return %c0_i32, %c0_i32_0 : i32, i32
  }
}

</mosaic_0001>

<llo_original>
// kernel: backbone_forward.2
$region0: #{backbone_forward.2}
  #allocation0 [shape = 'u32[]', space=smem, size = 0x4, offset = 0x4, fixed_abs, tag = 'smem constant byte address 0x4 - core index']
  #allocation1 [shape = 'u32[144,128]{1,0:T(1,128)}', space=vmem, size = 0x12000, scoped, tag = 'internal scratch']
  #allocation2 [shape = 'f32[1,128]{1,0:T(1,128)}', space=vmem, size = 0x200, scoped, tag = 'scratch operand']
  %s0 = inlined_call_operand.vmem [shape: bf16[2,256,36], index: 0, kind: input, shape index: {}]
  %s1 = inlined_call_operand.vmem [shape: bf16[36,128], index: 1, kind: input, shape index: {}]
  %s2 = inlined_call_operand.vmem [shape: f32[1,128], index: 2, kind: input, shape index: {}]
  %s3 = inlined_call_operand.vmem [shape: f32[2,1,128], index: 3, kind: output, shape index: {}]
  %s4 = sld [smem:[#allocation0]]
  $region53: #{backbone_forward.2} parent=0
    _
  %s6 = ssub.s32 1, %s4
  %s7 = scalar_select 0, %s6, %s4
  loop: start=0, step=1, limit=4
  $region2: #{backbone_forward.2} parent=0 // loop_pre_header
    _
  $region3: #{backbone_forward.2} parent=0 // loop_header
    %s9 = sphi 0, %s13
    %p10 = scmp.ge.s32.totalorder %s9, 4
    %s16 = sphi 0, %s28
    %s17 = sphi 0, %s24
    %s18 = sphi 0, %s16
    %s19 = sphi 0, %s17
    %s20 = sphi 0, %s18
    %s21 = sphi 0, %s19
    %s33 = sphi 0, %s35
    %s36 = sphi 0, %s33
    %s37 = sphi 0, %s36
    %s53 = sphi 0, %s37
    %s57 = sphi 0, %s57
    %s59 = sphi 0, %s57
    %s60 = sphi 0, %s59
    %s74 = sphi 0, %s60
    %s78 = sphi 0, %s78
    %s80 = sphi 0, %s78
    %s81 = sphi 0, %s80
    %s95 = sphi 0, %s81
    %s101 = sphi 0, %s103
    %s104 = sphi 0, %s101
    %s105 = sphi 0, %s104
    %s121 = sphi 0, %s105
  $region4: #{backbone_forward.2} parent=0 // loop_header_branch
    %12 = sbr.rel (%p10) target = $region8
  $region5: #{backbone_forward.2} parent=0 // loop_body
    %s14 = ssub.s32 %s9, 1
    %s15 = ssub.s32 %s9, 2
    %s22 = sadd.s32 1, %s17
    %p23 = scmp.ge.s32.totalorder %s22, 1
    %s24 = scalar_select %p23, 0, %s22
    %s25 = sadd.s32 1, %s16
    %s26 = scalar_select %p23, %s25, %s16
    %p27 = scmp.ge.s32.totalorder %s26, 2
    %s28 = scalar_select %p27, 0, %s26
    %s29 = ssub.s32 %s16, %s28
    %s30 = ssub.s32 %s17, %s24
    %s31 = sor.u32 %s29, %s30
    %p32 = scmp.eq.s32.totalorder %s31, 0
    %s34 = sadd.s32 %s33, 1
    %s35 = scalar_select %p32, %s33, %s34
    %p38 = pneg %p32
    %p39 = scmp.eq.s32.totalorder %s9, 1
    %p40 = por %p38, %p39
    %p41 = scmp.ne.s32.totalorder %s33, %s36
    %p42 = scmp.eq.s32.totalorder %s9, 0
    %p43 = por %p41, %p42
    %p44 = scmp.ne.s32.totalorder %s33, %s36
    %p45 = scmp.eq.s32.totalorder %s14, 1
    %p46 = por %p44, %p45
    %p47 = scmp.ne.s32.totalorder %s36, %s37
    %p48 = scmp.eq.s32.totalorder %s14, 0
    %p49 = por %p47, %p48
    %p50 = scmp.ne.s32.totalorder %s36, %s37
    %p51 = scmp.eq.s32.totalorder %s15, 1
    %p52 = por %p50, %p51
    %p54 = scmp.ne.s32.totalorder %s37, %s53
    %p55 = scmp.eq.s32.totalorder %s15, 0
    %p56 = por %p54, %p55
    %s58 = sadd.s32 %s57, 1
    %p61 = scmp.eq.s32.totalorder %s9, 1
    %p62 = scmp.ne.s32.totalorder %s57, %s59
    %p63 = scmp.eq.s32.totalorder %s9, 0
    %p64 = por %p62, %p63
    %p65 = scmp.ne.s32.totalorder %s57, %s59
    %p66 = scmp.eq.s32.totalorder %s14, 1
    %p67 = por %p65, %p66
    %p68 = scmp.ne.s32.totalorder %s59, %s60
    %p69 = scmp.eq.s32.totalorder %s14, 0
    %p70 = por %p68, %p69
    %p71 = scmp.ne.s32.totalorder %s59, %s60
    %p72 = scmp.eq.s32.totalorder %s15, 1
    %p73 = por %p71, %p72
    %p75 = scmp.ne.s32.totalorder %s60, %s74
    %p76 = scmp.eq.s32.totalorder %s15, 0
    %p77 = por %p75, %p76
    %s79 = sadd.s32 %s78, 1
    %p82 = scmp.eq.s32.totalorder %s9, 1
    %p83 = scmp.ne.s32.totalorder %s78, %s80
    %p84 = scmp.eq.s32.totalorder %s9, 0
    %p85 = por %p83, %p84
    %p86 = scmp.ne.s32.totalorder %s78, %s80
    %p87 = scmp.eq.s32.totalorder %s14, 1
    %p88 = por %p86, %p87
    %p89 = scmp.ne.s32.totalorder %s80, %s81
    %p90 = scmp.eq.s32.totalorder %s14, 0
    %p91 = por %p89, %p90
    %p92 = scmp.ne.s32.totalorder %s80, %s81
    %p93 = scmp.eq.s32.totalorder %s15, 1
    %p94 = por %p92, %p93
    %p96 = scmp.ne.s32.totalorder %s81, %s95
    %p97 = scmp.eq.s32.totalorder %s15, 0
    %p98 = por %p96, %p97
    %s99 = ssub.s32 %s16, %s28
    %p100 = scmp.eq.s32.totalorder %s99, 0
    %s102 = sadd.s32 %s101, 1
    %s103 = scalar_select %p100, %s101, %s102
    %p106 = pneg %p100
    %p107 = scmp.eq.s32.totalorder %s9, 1
    %p108 = por %p106, %p107
    %p109 = scmp.ne.s32.totalorder %s101, %s104
    %p110 = scmp.eq.s32.totalorder %s9, 0
    %p111 = por %p109, %p110
    %p112 = scmp.ne.s32.totalorder %s101, %s104
    %p113 = scmp.eq.s32.totalorder %s14, 1
    %p114 = por %p112, %p113
    %p115 = scmp.ne.s32.totalorder %s104, %s105
    %p116 = scmp.eq.s32.totalorder %s14, 0
    %p117 = por %p115, %p116
    %p118 = scmp.ne.s32.totalorder %s104, %s105
    %p119 = scmp.eq.s32.totalorder %s15, 1
    %p120 = por %p118, %p119
    %p122 = scmp.ne.s32.totalorder %s105, %s121
    %p123 = scmp.eq.s32.totalorder %s15, 0
    %p124 = por %p122, %p123
    %p125 = scmp.le.s32.totalorder 1, %s9
    %p126 = scmp.lt.s32.totalorder %s9, 3
    %p127 = pnand %p125, %p126
    %p128 = pneg %p127
    // Predicated region
    $region9: #{backbone_forward.2} parent=5 // pred_check
      _
    $region10: #{backbone_forward.2} parent=5 // pred_check_branch
      %130 = sbr.rel (%p127) target = $region12
    $region11: #{backbone_forward.2} parent=5 // pred_region
      %s131 = ssub.s32 %s9, 1
      // Predicated region
      $region13: #{backbone_forward.2} parent=11 // pred_check
        %p132 = pneg %p70
      $region14: #{backbone_forward.2} parent=11 // pred_check_branch
        %134 = sbr.rel (%p132) target = $region16
      $region15: #{backbone_forward.2} parent=11 // pred_region
        _
      $region16: #{backbone_forward.2} parent=11 // pred_fallthru
        _
      // Predicated region
      $region17: #{backbone_forward.2} parent=11 // pred_check
        %p135 = pneg %p91
      $region18: #{backbone_forward.2} parent=11 // pred_check_branch
        %137 = sbr.rel (%p135) target = $region20
      $region19: #{backbone_forward.2} parent=11 // pred_region
        _
      $region20: #{backbone_forward.2} parent=11 // pred_fallthru
        _
    $region12: #{backbone_forward.2} parent=5 // pred_fallthru
      _
    %p138 = scmp.lt.s32.totalorder %s9, 2
    // Predicated region
    $region21: #{backbone_forward.2} parent=5 // pred_check
      %p139 = pneg %p138
    $region22: #{backbone_forward.2} parent=5 // pred_check_branch
      %141 = sbr.rel (%p139) target = $region24
    $region23: #{backbone_forward.2} parent=5 // pred_region
      // Predicated region
      $region25: #{backbone_forward.2} parent=23 // pred_check
        %p142 = pneg %p43
      $region26: #{backbone_forward.2} parent=23 // pred_check_branch
        %144 = sbr.rel (%p142) target = $region28
      $region27: #{backbone_forward.2} parent=23 // pred_region
        %s145 = smul.u32 32, %s17
        %p146 = scmp.lt.s32.totalorder %s16, 1
        %s147 = scalar_select %p146, %s16, 1
        %p148 = scmp.lt.s32.totalorder %s145, 31
        %s149 = scalar_select %p148, %s145, 31
        %s150 = smul.addr %s147, 32
        %s151 = sadd.s32 %s149, %s150
        %s152 = smul.addr %s151, 4
        %s153 = scalar_lea.vmem %s0, %s152
        %s154 = smul.u32 32, %s17
      $region28: #{backbone_forward.2} parent=23 // pred_fallthru
        _
    $region24: #{backbone_forward.2} parent=5 // pred_fallthru
      _
    %p155 = scmp.le.s32.totalorder 1, %s9
    %p156 = scmp.lt.s32.totalorder %s9, 3
    %p157 = pnand %p155, %p156
    %p158 = pneg %p157
    // Predicated region
    $region29: #{backbone_forward.2} parent=5 // pred_check
      _
    $region30: #{backbone_forward.2} parent=5 // pred_check_branch
      %160 = sbr.rel (%p157) target = $region32
    $region31: #{backbone_forward.2} parent=5 // pred_region
      %s161 = ssub.s32 %s9, 1
      %s162 = smul.u32 32, %s19
      %p163 = scmp.lt.s32.totalorder %s18, 1
      %s164 = scalar_select %p163, %s18, 1
      %p165 = scmp.lt.s32.totalorder %s162, 31
      %s166 = scalar_select %p165, %s162, 31
      %s167 = smul.addr %s164, 32
      %s168 = sadd.s32 %s166, %s167
      %s169 = smul.addr %s168, 4
      %s170 = scalar_lea.vmem %s0, %s169
      %p171 = pneg %p49
      %p172 = pneg %p46
      %p173 = pneg %p70
      %p174 = pneg %p67
      %p175 = pneg %p91
      %p176 = pneg %p88
      %p177 = pneg %p117
      %p178 = pneg %p114
      %p179 = scmp.lt.s32.totalorder %s18, 1
      %s180 = scalar_select %p179, %s18, 1
      %s181 = scalar_lea.vmem %s3, %s180
      %s182 = smul.u32 32, %s19
      %p183 = scmp.lt.s32.totalorder %s18, 1
      %s184 = scalar_select %p183, %s18, 1
      %p185 = scmp.lt.s32.totalorder %s182, 31
      %s186 = scalar_select %p185, %s182, 31
      %s187 = smul.addr %s184, 32
      %s188 = sadd.s32 %s186, %s187
      %s189 = smul.addr %s188, 4
      %s190 = scalar_lea.vmem %s0, %s189
      %s191 = smul.u32 32, %s19
      %p192 = scmp.lt.s32.totalorder %s18, 1
      %s193 = scalar_select %p192, %s18, 1
      %s194 = scalar_lea.vmem %s3, %s193
      %p196 = scmp.eq.s32.totalorder %s19, 0
      // Predicated region
      $region33: #{backbone_forward.2} parent=31 // pred_check
        %p197 = pneg %p196
      $region34: #{backbone_forward.2} parent=31 // pred_check_branch
        %199 = sbr.rel (%p197) target = $region36
      $region35: #{backbone_forward.2} parent=31 // pred_region
        %200 = vst [vmem:[#allocation2] sm:$0x1] 0.0
      $region36: #{backbone_forward.2} parent=31 // pred_fallthru
        _
      %v201 = vld [vmem:[%s190] sm:$0xf]
      %v202 = vld [vmem:[%s190 + $0x4] sm:$0xf]
      %v203 = vld [vmem:[%s190 + $0x8] sm:$0xf]
      %v204 = vld [vmem:[%s190 + $0xc] sm:$0xf]
      %v205 = vld [vmem:[%s190 + $0x10] sm:$0xf]
      %v206 = vld [vmem:[%s190 + $0x14] sm:$0xf]
      %v207 = vld [vmem:[%s190 + $0x18] sm:$0xf]
      %v208 = vld [vmem:[%s190 + $0x1c] sm:$0xf]
      %v209 = vld [vmem:[%s190 + $0x20] sm:$0xf]
      %v210 = vld [vmem:[%s190 + $0x24] sm:$0xf]
      %v211 = vld [vmem:[%s190 + $0x28] sm:$0xf]
      %v212 = vld [vmem:[%s190 + $0x2c] sm:$0xf]
      %v213 = vld [vmem:[%s190 + $0x30] sm:$0xf]
      %v214 = vld [vmem:[%s190 + $0x34] sm:$0xf]
      %v215 = vld [vmem:[%s190 + $0x38] sm:$0xf]
      %v216 = vld [vmem:[%s190 + $0x3c] sm:$0xf]
      %v217 = vld [vmem:[%s190 + $0x40] sm:$0xf]
      %v218 = vld [vmem:[%s190 + $0x44] sm:$0xf]
      %v219 = vld [vmem:[%s190 + $0x48] sm:$0xf]
      %v220 = vld [vmem:[%s190 + $0x4c] sm:$0xf]
      %v221 = vld [vmem:[%s190 + $0x50] sm:$0xf]
      %v222 = vld [vmem:[%s190 + $0x54] sm:$0xf]
      %v223 = vld [vmem:[%s190 + $0x58] sm:$0xf]
      %v224 = vld [vmem:[%s190 + $0x5c] sm:$0xf]
      %v225 = vld [vmem:[%s190 + $0x60] sm:$0xf]
      %v226 = vld [vmem:[%s190 + $0x64] sm:$0xf]
      %v227 = vld [vmem:[%s190 + $0x68] sm:$0xf]
      %v228 = vld [vmem:[%s190 + $0x6c] sm:$0xf]
      %v229 = vld [vmem:[%s190 + $0x70] sm:$0xf]
      %v230 = vld [vmem:[%s190 + $0x74] sm:$0xf]
      %v231 = vld [vmem:[%s190 + $0x78] sm:$0xf]
      %v232 = vld [vmem:[%s190 + $0x7c] sm:$0xf]
      %v233 = vld [vmem:[%s1] sm:$0xf]
      %v234 = vld [vmem:[%s1 + $0x4] sm:$0xf]
      %v235 = vld [vmem:[%s1 + $0x8] sm:$0xf]
      %v236 = vld [vmem:[%s1 + $0xc] sm:$0xf]
      %v237 = vld [vmem:[%s1 + $0x10] sm:$0x3]
      %v238 = vld [vmem:[%s2] sm:$0x1]
      %v240 = vlaneseq
      %v241 = vshrl.u32 %v240, 7
      %v242 = vsub.s32 0, %v241
      %v243 = vrot.slane %v238, %v242
      %v277 = vunpack.c.l.b16 %v201
      %v278 = vunpack.c.l.b16 %v202
      %v279 = vunpack.c.l.b16 %v203
      %v280 = vunpack.c.l.b16 %v204
      %v281 = vunpack.c.l.b16 %v205
      %v282 = vunpack.c.l.b16 %v206
      %v283 = vunpack.c.l.b16 %v207
      %v284 = vunpack.c.l.b16 %v208
      %v285 = vunpack.c.l.b16 %v209
      %v286 = vunpack.c.l.b16 %v210
      %v287 = vunpack.c.l.b16 %v211
      %v288 = vunpack.c.l.b16 %v212
      %v289 = vunpack.c.l.b16 %v213
      %v290 = vunpack.c.l.b16 %v214
      %v291 = vunpack.c.l.b16 %v215
      %v292 = vunpack.c.l.b16 %v216
      %v293 = vunpack.c.l.b16 %v217
      %v294 = vunpack.c.l.b16 %v218
      %v295 = vunpack.c.l.b16 %v219
      %v296 = vunpack.c.l.b16 %v220
      %v297 = vunpack.c.l.b16 %v221
      %v298 = vunpack.c.l.b16 %v222
      %v299 = vunpack.c.l.b16 %v223
      %v300 = vunpack.c.l.b16 %v224
      %v301 = vunpack.c.l.b16 %v225
      %v302 = vunpack.c.l.b16 %v226
      %v303 = vunpack.c.l.b16 %v227
      %v304 = vunpack.c.l.b16 %v228
      %v305 = vunpack.c.l.b16 %v229
      %v306 = vunpack.c.l.b16 %v230
      %v307 = vunpack.c.l.b16 %v231
      %v308 = vunpack.c.l.b16 %v232
      %v309 = vpack.c.b16 %v278, %v277
      %v310 = vpack.c.b16 %v280, %v279
      %v311 = vpack.c.b16 %v282, %v281
      %v312 = vpack.c.b16 %v284, %v283
      %v313 = vpack.c.b16 %v286, %v285
      %v314 = vpack.c.b16 %v288, %v287
      %v315 = vpack.c.b16 %v290, %v289
      %v316 = vpack.c.b16 %v292, %v291
      %v317 = vpack.c.b16 %v294, %v293
      %v318 = vpack.c.b16 %v296, %v295
      %v319 = vpack.c.b16 %v298, %v297
      %v320 = vpack.c.b16 %v300, %v299
      %v321 = vpack.c.b16 %v302, %v301
      %v322 = vpack.c.b16 %v304, %v303
      %v323 = vpack.c.b16 %v306, %v305
      %v324 = vpack.c.b16 %v308, %v307
      %v330 = vunpack.c.l.b16 %v233
      %v331 = vunpack.c.l.b16 %v234
      %v332 = vunpack.c.l.b16 %v235
      %v333 = vunpack.c.l.b16 %v236
      %v334 = vunpack.c.l.b16 %v237
      %v335 = vpack.c.b16 %v331, %v330
      %v336 = vpack.c.b16 %v333, %v332
      %v337 = vpack.c.b16 %v334, %v334
      %vm340 = vcmask 293888
      %v342 = vsel %vm340, %v309, 0
      %v345 = vsel %vm340, %v310, 0
      %v348 = vsel %vm340, %v311, 0
      %v351 = vsel %vm340, %v312, 0
      %v354 = vsel %vm340, %v313, 0
      %v357 = vsel %vm340, %v314, 0
      %v360 = vsel %vm340, %v315, 0
      %v363 = vsel %vm340, %v316, 0
      %v366 = vsel %vm340, %v317, 0
      %v369 = vsel %vm340, %v318, 0
      %v372 = vsel %vm340, %v319, 0
      %v375 = vsel %vm340, %v320, 0
      %v378 = vsel %vm340, %v321, 0
      %v381 = vsel %vm340, %v322, 0
      %v384 = vsel %vm340, %v323, 0
      %v387 = vsel %vm340, %v324, 0
      %vm389 = vcmask 1041408
      %v391 = vsel %vm389, %v337, 0
      %393 = vmatprep.subr.bf16.mxu0 0
      %394 = vmatpush1.bf16.msra.mxu0 %v335
      %395 = vmatprep.subr.bf16.mxu0 0
      %396 = vmatpush1.bf16.msra.mxu0 %v336
      %397 = vmatprep.subr.bf16.mxu0 0
      %398 = vmatpush1.bf16.msra.mxu0 %v391
      %399 = vmatprep.subr.bf16.mxu0 0
      %400 = vmatpush1.bf16.msra.mxu0 0
      %401 = vmatprep.subr.bf16.mxu0 0
      %402 = vmatpush1.bf16.msra.mxu0 0
      %403 = vmatprep.subr.bf16.mxu0 0
      %404 = vmatpush1.bf16.msra.mxu0 0
      %405 = vmatprep.subr.bf16.mxu0 0
      %406 = vmatpush1.bf16.msra.mxu0 0
      %407 = vmatprep.subr.bf16.mxu0 0
      %408 = vmatpush1.bf16.msra.mxu0 0
      %409 = vmatprep.subr.bf16.mxu0 0
      %410 = vmatpush1.bf16.msra.mxu0 0
      %411 = vmatprep.subr.bf16.mxu0 0
      %412 = vmatpush1.bf16.msra.mxu0 0
      %413 = vmatprep.subr.bf16.mxu0 0
      %414 = vmatpush1.bf16.msra.mxu0 0
      %415 = vmatprep.subr.bf16.mxu0 0
      %416 = vmatpush1.bf16.msra.mxu0 0
      %417 = vmatprep.subr.bf16.mxu0 0
      %418 = vmatpush1.bf16.msra.mxu0 0
      %419 = vmatprep.subr.bf16.mxu0 0
      %420 = vmatpush1.bf16.msra.mxu0 0
      %421 = vmatprep.subr.bf16.mxu0 0
      %422 = vmatpush1.bf16.msra.mxu0 0
      %423 = vmatprep.subr.bf16.mxu0 0
      %424 = vmatpush1.bf16.msra.mxu0 0
      %425 = vmatprep.mubr.bf16.mxu0 0
      %426 = vmatmul.mubr.bf16.gmra.mrb[0].mxu0 %v342
      %v427 = vpop.f32.mrb[0].mxu0
      %v428 = vadd.f32 %v243, %v427
      %v429 = vpop.f32.mrb[0].mxu0
      %v430 = vpop.f32.mrb[0].mxu0
      %v431 = vadd.f32 %v243, %v430
      %v432 = vpop.f32.mrb[0].mxu0
      %433 = vmatprep.mubr.bf16.mxu0 0
      %434 = vmatmul.mubr.bf16.gmra.mrb[0].mxu0 %v345
      %v435 = vpop.f32.mrb[0].mxu0
      %v436 = vadd.f32 %v243, %v435
      %v437 = vpop.f32.mrb[0].mxu0
      %v438 = vpop.f32.mrb[0].mxu0
      %v439 = vadd.f32 %v243, %v438
      %v440 = vpop.f32.mrb[0].mxu0
      %441 = vmatprep.mubr.bf16.mxu0 0
      %442 = vmatmul.mubr.bf16.gmra.mrb[0].mxu0 %v348
      %v443 = vpop.f32.mrb[0].mxu0
      %v444 = vadd.f32 %v243, %v443
      %v445 = vpop.f32.mrb[0].mxu0
      %v446 = vpop.f32.mrb[0].mxu0
      %v447 = vadd.f32 %v243, %v446
      %v448 = vpop.f32.mrb[0].mxu0
      %449 = vmatprep.mubr.bf16.mxu0 0
      %450 = vmatmul.mubr.bf16.gmra.mrb[0].mxu0 %v351
      %v451 = vpop.f32.mrb[0].mxu0
      %v452 = vadd.f32 %v243, %v451
      %v453 = vpop.f32.mrb[0].mxu0
      %v454 = vpop.f32.mrb[0].mxu0
      %v455 = vadd.f32 %v243, %v454
      %v456 = vpop.f32.mrb[0].mxu0
      %457 = vmatprep.mubr.bf16.mxu0 0
      %458 = vmatmul.mubr.bf16.gmra.mrb[0].mxu0 %v354
      %v459 = vpop.f32.mrb[0].mxu0
      %v460 = vadd.f32 %v243, %v459
      %v461 = vpop.f32.mrb[0].mxu0
      %v462 = vpop.f32.mrb[0].mxu0
      %v463 = vadd.f32 %v243, %v462
      %v464 = vpop.f32.mrb[0].mxu0
      %465 = vmatprep.mubr.bf16.mxu0 0
      %466 = vmatmul.mubr.bf16.gmra.mrb[0].mxu0 %v357
      %v467 = vpop.f32.mrb[0].mxu0
      %v468 = vadd.f32 %v243, %v467
      %v469 = vpop.f32.mrb[0].mxu0
      %v470 = vpop.f32.mrb[0].mxu0
      %v471 = vadd.f32 %v243, %v470
      %v472 = vpop.f32.mrb[0].mxu0
      %473 = vmatprep.mubr.bf16.mxu0 0
      %474 = vmatmul.mubr.bf16.gmra.mrb[0].mxu0 %v360
      %v475 = vpop.f32.mrb[0].mxu0
      %v476 = vadd.f32 %v243, %v475
      %v477 = vpop.f32.mrb[0].mxu0
      %v478 = vpop.f32.mrb[0].mxu0
      %v479 = vadd.f32 %v243, %v478
      %v480 = vpop.f32.mrb[0].mxu0
      %481 = vmatprep.mubr.bf16.mxu0 0
      %482 = vmatmul.mubr.bf16.gmra.mrb[0].mxu0 %v363
      %v483 = vpop.f32.mrb[0].mxu0
      %v484 = vadd.f32 %v243, %v483
      %v485 = vpop.f32.mrb[0].mxu0
      %v486 = vpop.f32.mrb[0].mxu0
      %v487 = vadd.f32 %v243, %v486
      %v488 = vpop.f32.mrb[0].mxu0
      %489 = vmatprep.mubr.bf16.mxu0 0
      %490 = vmatmul.mubr.bf16.gmra.mrb[0].mxu0 %v366
      %v491 = vpop.f32.mrb[0].mxu0
      %v492 = vadd.f32 %v243, %v491
      %v493 = vpop.f32.mrb[0].mxu0
      %v494 = vpop.f32.mrb[0].mxu0
      %v495 = vadd.f32 %v243, %v494
      %v496 = vpop.f32.mrb[0].mxu0
      %497 = vmatprep.mubr.bf16.mxu0 0
      %498 = vmatmul.mubr.bf16.gmra.mrb[0].mxu0 %v369
      %v499 = vpop.f32.mrb[0].mxu0
      %v500 = vadd.f32 %v243, %v499
      %v501 = vpop.f32.mrb[0].mxu0
      %v502 = vpop.f32.mrb[0].mxu0
      %v503 = vadd.f32 %v243, %v502
      %v504 = vpop.f32.mrb[0].mxu0
      %505 = vmatprep.mubr.bf16.mxu0 0
      %506 = vmatmul.mubr.bf16.gmra.mrb[0].mxu0 %v372
      %v507 = vpop.f32.mrb[0].mxu0
      %v508 = vadd.f32 %v243, %v507
      %v509 = vpop.f32.mrb[0].mxu0
      %v510 = vpop.f32.mrb[0].mxu0
      %v511 = vadd.f32 %v243, %v510
      %v512 = vpop.f32.mrb[0].mxu0
      %513 = vmatprep.mubr.bf16.mxu0 0
      %514 = vmatmul.mubr.bf16.gmra.mrb[0].mxu0 %v375
      %v515 = vpop.f32.mrb[0].mxu0
      %v516 = vadd.f32 %v243, %v515
      %v517 = vpop.f32.mrb[0].mxu0
      %v518 = vpop.f32.mrb[0].mxu0
      %v519 = vadd.f32 %v243, %v518
      %v520 = vpop.f32.mrb[0].mxu0
      %521 = vmatprep.mubr.bf16.mxu0 0
      %522 = vmatmul.mubr.bf16.gmra.mrb[0].mxu0 %v378
      %v523 = vpop.f32.mrb[0].mxu0
      %v524 = vadd.f32 %v243, %v523
      %v525 = vpop.f32.mrb[0].mxu0
      %v526 = vpop.f32.mrb[0].mxu0
      %v527 = vadd.f32 %v243, %v526
      %v528 = vpop.f32.mrb[0].mxu0
      %529 = vmatprep.mubr.bf16.mxu0 0
      %530 = vmatmul.mubr.bf16.gmra.mrb[0].mxu0 %v381
      %v531 = vpop.f32.mrb[0].mxu0
      %v532 = vadd.f32 %v243, %v531
      %v533 = vpop.f32.mrb[0].mxu0
      %v534 = vpop.f32.mrb[0].mxu0
      %v535 = vadd.f32 %v243, %v534
      %v536 = vpop.f32.mrb[0].mxu0
      %537 = vmatprep.mubr.bf16.mxu0 0
      %538 = vmatmul.mubr.bf16.gmra.mrb[0].mxu0 %v384
      %v539 = vpop.f32.mrb[0].mxu0
      %v540 = vadd.f32 %v243, %v539
      %v541 = vpop.f32.mrb[0].mxu0
      %v542 = vpop.f32.mrb[0].mxu0
      %v543 = vadd.f32 %v243, %v542
      %v544 = vpop.f32.mrb[0].mxu0
      %545 = vmatprep.mubr.bf16.mxu0 0
      %546 = vmatmul.mubr.bf16.gmra.mrb[0].mxu0 %v387
      %v547 = vpop.f32.mrb[0].mxu0
      %v548 = vadd.f32 %v243, %v547
      %v549 = vpop.f32.mrb[0].mxu0
      %v550 = vpop.f32.mrb[0].mxu0
      %v551 = vadd.f32 %v243, %v550
      %v552 = vpop.f32.mrb[0].mxu0
      %553 = vdwg.mxu0
      %v554 = vmax.f32 %v428, 0.0
      %v555 = vmax.f32 %v431, 0.0
      %v556 = vmax.f32 %v436, 0.0
      %v557 = vmax.f32 %v439, 0.0
      %v558 = vmax.f32 %v444, 0.0
      %v559 = vmax.f32 %v447, 0.0
      %v560 = vmax.f32 %v452, 0.0
      %v561 = vmax.f32 %v455, 0.0
      %v562 = vmax.f32 %v460, 0.0
      %v563 = vmax.f32 %v463, 0.0
      %v564 = vmax.f32 %v468, 0.0
      %v565 = vmax.f32 %v471, 0.0
      %v566 = vmax.f32 %v476, 0.0
      %v567 = vmax.f32 %v479, 0.0
      %v568 = vmax.f32 %v484, 0.0
      %v569 = vmax.f32 %v487, 0.0
      %v570 = vmax.f32 %v492, 0.0
      %v571 = vmax.f32 %v495, 0.0
      %v572 = vmax.f32 %v500, 0.0
      %v573 = vmax.f32 %v503, 0.0
      %v574 = vmax.f32 %v508, 0.0
      %v575 = vmax.f32 %v511, 0.0
      %v576 = vmax.f32 %v516, 0.0
      %v577 = vmax.f32 %v519, 0.0
      %v578 = vmax.f32 %v524, 0.0
      %v579 = vmax.f32 %v527, 0.0
      %v580 = vmax.f32 %v532, 0.0
      %v581 = vmax.f32 %v535, 0.0
      %v582 = vmax.f32 %v540, 0.0
      %v583 = vmax.f32 %v543, 0.0
      %v584 = vmax.f32 %v548, 0.0
      %v585 = vmax.f32 %v551, 0.0
      %s586 = smul.u32 %s19, 256
      %v587 = vlaneseq
      %v588 = vand.u32 %v587, 127
      %v589 = vadd.s32 %v588, 128
      %v590 = vstv %s586
      %v591 = vadd.s32 %v590, %v588
      %v592 = vadd.s32 %v590, %v589
      %vm593 = vcmp.lt.s32.totalorder %v591, 256
      %vm594 = vcmp.lt.s32.totalorder %v592, 256
      %v595 = vsel %vm593, 1, 0
      %v596 = vsel %vm594, 1, 0
      %v597 = vcvt.s32.f32 %v595
      %v598 = vcvt.s32.f32 %v596
      %v599 = vpack.c.bf16 %v597, %v597
      %v600 = vpack.c.bf16 %v598, %v598
      %v601 = vld [vmem:[#allocation2] sm:$0x1]
      %v602 = vpack.c.bf16 %v555, %v554
      %v603 = vpack.c.bf16 %v557, %v556
      %v604 = vpack.c.bf16 %v559, %v558
      %v605 = vpack.c.bf16 %v561, %v560
      %v606 = vpack.c.bf16 %v563, %v562
      %v607 = vpack.c.bf16 %v565, %v564
      %v608 = vpack.c.bf16 %v567, %v566
      %v609 = vpack.c.bf16 %v569, %v568
      %v610 = vpack.c.bf16 %v571, %v570
      %v611 = vpack.c.bf16 %v573, %v572
      %v612 = vpack.c.bf16 %v575, %v574
      %v613 = vpack.c.bf16 %v577, %v576
      %v614 = vpack.c.bf16 %v579, %v578
      %v615 = vpack.c.bf16 %v581, %v580
      %v616 = vpack.c.bf16 %v583, %v582
      %v617 = vpack.c.bf16 %v585, %v584
      %618 = vmatprep.subr.bf16.mxu0 0
      %619 = vmatpush1.bf16.msra.mxu0 %v602
      %620 = vmatprep.subr.bf16.mxu0 0
      %621 = vmatpush1.bf16.msra.mxu0 %v603
      %622 = vmatprep.subr.bf16.mxu0 0
      %623 = vmatpush1.bf16.msra.mxu0 %v604
      %624 = vmatprep.subr.bf16.mxu0 0
      %625 = vmatpush1.bf16.msra.mxu0 %v605
      %626 = vmatprep.subr.bf16.mxu0 0
      %627 = vmatpush1.bf16.msra.mxu0 %v606
      %628 = vmatprep.subr.bf16.mxu0 0
      %629 = vmatpush1.bf16.msra.mxu0 %v607
      %630 = vmatprep.subr.bf16.mxu0 0
      %631 = vmatpush1.bf16.msra.mxu0 %v608
      %632 = vmatprep.subr.bf16.mxu0 0
      %633 = vmatpush1.bf16.msra.mxu0 %v609
      %634 = vmatprep.subr.bf16.mxu0 0
      %635 = vmatpush1.bf16.msra.mxu0 %v610
      %636 = vmatprep.subr.bf16.mxu0 0
      %637 = vmatpush1.bf16.msra.mxu0 %v611
      %638 = vmatprep.subr.bf16.mxu0 0
      %639 = vmatpush1.bf16.msra.mxu0 %v612
      %640 = vmatprep.subr.bf16.mxu0 0
      %641 = vmatpush1.bf16.msra.mxu0 %v613
      %642 = vmatprep.subr.bf16.mxu0 0
      %643 = vmatpush1.bf16.msra.mxu0 %v614
      %644 = vmatprep.subr.bf16.mxu0 0
      %645 = vmatpush1.bf16.msra.mxu0 %v615
      %646 = vmatprep.subr.bf16.mxu0 0
      %647 = vmatpush1.bf16.msra.mxu0 %v616
      %648 = vmatprep.subr.bf16.mxu0 0
      %649 = vmatpush1.bf16.msra.mxu0 %v617
      %650 = vmatprep.mubr.bf16.mxu0 %v600
      %651 = vmatmul.mubr.bf16.gmra.mrb[0].mxu0 %v599
      %v652 = vpop.f32.mrb[0].mxu0
      %v653 = vadd.f32 0.0, %v652
      %v654 = vpop.f32.mrb[0].mxu0
      %v655 = vpop.f32.mrb[0].mxu0
      %v656 = vpop.f32.mrb[0].mxu0
      %657 = vdwg.mxu0
      %v658 = vadd.f32 %v601, %v653
      %659 = vst [vmem:[#allocation2] sm:$0x1] %v658
      // Predicated region
      $region37: #{backbone_forward.2} parent=31 // pred_check
        %p660 = pneg %p196
      $region38: #{backbone_forward.2} parent=31 // pred_check_branch
        %662 = sbr.rel (%p660) target = $region40
      $region39: #{backbone_forward.2} parent=31 // pred_region
        %v663 = vld [vmem:[#allocation2] sm:$0x1]
        %v664 = vmul.f32 %v663, 0.00390625
        %665 = vst [vmem:[%s194] sm:$0x1] %v664
      $region40: #{backbone_forward.2} parent=31 // pred_fallthru
        _
      %p666 = scmp.lt.s32.totalorder %s18, 1
      %s667 = scalar_select %p666, %s18, 1
      %s668 = scalar_lea.vmem %s3, %s667
      // Predicated region
      $region41: #{backbone_forward.2} parent=31 // pred_check
        %p669 = pneg %p114
      $region42: #{backbone_forward.2} parent=31 // pred_check_branch
        %671 = sbr.rel (%p669) target = $region44
      $region43: #{backbone_forward.2} parent=31 // pred_region
        _
      $region44: #{backbone_forward.2} parent=31 // pred_fallthru
        _
    $region32: #{backbone_forward.2} parent=5 // pred_fallthru
      _
    %p672 = scmp.le.s32.totalorder 2, %s9
    // Predicated region
    $region45: #{backbone_forward.2} parent=5 // pred_check
      %p673 = pneg %p672
    $region46: #{backbone_forward.2} parent=5 // pred_check_branch
      %675 = sbr.rel (%p673) target = $region48
    $region47: #{backbone_forward.2} parent=5 // pred_region
      %s676 = ssub.s32 %s9, 2
      // Predicated region
      $region49: #{backbone_forward.2} parent=47 // pred_check
        %p677 = pneg %p120
      $region50: #{backbone_forward.2} parent=47 // pred_check_branch
        %679 = sbr.rel (%p677) target = $region52
      $region51: #{backbone_forward.2} parent=47 // pred_region
        %p680 = scmp.lt.s32.totalorder %s20, 1
        %s681 = scalar_select %p680, %s20, 1
        %s682 = scalar_lea.vmem %s3, %s681
      $region52: #{backbone_forward.2} parent=47 // pred_fallthru
        _
    $region48: #{backbone_forward.2} parent=5 // pred_fallthru
      _
  $region6: #{backbone_forward.2} parent=0 // loop_footer
    %s13 = sadd.s32 1, %s9
  $region7: #{backbone_forward.2} parent=0 // loop_footer_branch
    %8 = sbr.rel target = $region3
  $region8: #{backbone_forward.2} parent=0 // loop_exit
    _

// kernel: backbone_forward.3
$region0: #{backbone_forward.3}
  #allocation0 [shape = 'u32[]', space=smem, size = 0x4, offset = 0x4, fixed_abs, tag = 'smem constant byte address 0x4 - core index']
  #allocation1 [shape = 'u32[144,128]{1,0:T(1,128)}', space=vmem, size = 0x12000, scoped, tag = 'internal scratch']
  #allocation2 [shape = 'f32[2,128]{1,0:T(2,128)}', space=vmem, size = 0x400, scoped, tag = 'scratch operand']
  %s0 = inlined_call_operand.vmem [shape: bf16[2,128], index: 0, kind: input, shape index: {}]
  %s1 = inlined_call_operand.vmem [shape: bf16[128,128], index: 1, kind: input, shape index: {}]
  %s2 = inlined_call_operand.vmem [shape: f32[1,128], index: 2, kind: input, shape index: {}]
  %s3 = inlined_call_operand.vmem [shape: f32[1,128], index: 3, kind: input, shape index: {}]
  %s4 = inlined_call_operand.vmem [shape: f32[1,128], index: 4, kind: input, shape index: {}]
  %s5 = inlined_call_operand.vmem [shape: bf16[128,128], index: 5, kind: input, shape index: {}]
  %s6 = inlined_call_operand.vmem [shape: f32[1,128], index: 6, kind: input, shape index: {}]
  %s7 = inlined_call_operand.hbm [shape: f32[2,128], index: 7, kind: output, shape index: {}]
  %s8 = sld [smem:[#allocation0]]
  $region46: #{backbone_forward.3} parent=0
    _
  %s10 = ssub.s32 1, %s8
  %s11 = scalar_select 0, %s10, %s8
  $region1: #{backbone_forward.3} parent=0
    #allocation3 [shape = 'u8[1024]{0}', space=vmem, size = 0x400, scoped, tag = 'output window, operand 0, single buffered']
    #allocation4 [shape = 's32[1]{0}', space=sflag, size = 0x4, scoped, tag = 'scoped memory for backbone_forward.3']
    %12 = vsyncpa [#allocation4], 0
    // Predicated region
    $region2: #{backbone_forward.3} parent=1 // pred_check
      _
    $region3: #{backbone_forward.3} parent=1 // pred_check_branch
      %14 = sbr.rel (0) target = $region5
    $region4: #{backbone_forward.3} parent=1 // pred_region
      _
    $region5: #{backbone_forward.3} parent=1 // pred_fallthru
      _
    // Predicated region
    $region6: #{backbone_forward.3} parent=1 // pred_check
      _
    $region7: #{backbone_forward.3} parent=1 // pred_check_branch
      %16 = sbr.rel (0) target = $region9
    $region8: #{backbone_forward.3} parent=1 // pred_region
      _
    $region9: #{backbone_forward.3} parent=1 // pred_fallthru
      _
    // Predicated region
    $region10: #{backbone_forward.3} parent=1 // pred_check
      _
    $region11: #{backbone_forward.3} parent=1 // pred_check_branch
      %18 = sbr.rel (0) target = $region13
    $region12: #{backbone_forward.3} parent=1 // pred_region
      _
    $region13: #{backbone_forward.3} parent=1 // pred_fallthru
      _
    // Predicated region
    $region14: #{backbone_forward.3} parent=1 // pred_check
      _
    $region15: #{backbone_forward.3} parent=1 // pred_check_branch
      %20 = sbr.rel (0) target = $region17
    $region16: #{backbone_forward.3} parent=1 // pred_region
      _
    $region17: #{backbone_forward.3} parent=1 // pred_fallthru
      _
    // Predicated region
    $region18: #{backbone_forward.3} parent=1 // pred_check
      _
    $region19: #{backbone_forward.3} parent=1 // pred_check_branch
      %22 = sbr.rel (0) target = $region21
    $region20: #{backbone_forward.3} parent=1 // pred_region
      _
    $region21: #{backbone_forward.3} parent=1 // pred_fallthru
      _
    // Predicated region
    $region22: #{backbone_forward.3} parent=1 // pred_check
      _
    $region23: #{backbone_forward.3} parent=1 // pred_check_branch
      %24 = sbr.rel (0) target = $region25
    $region24: #{backbone_forward.3} parent=1 // pred_region
      _
    $region25: #{backbone_forward.3} parent=1 // pred_fallthru
      _
    // Predicated region
    $region26: #{backbone_forward.3} parent=1 // pred_check
      _
    $region27: #{backbone_forward.3} parent=1 // pred_check_branch
      %26 = sbr.rel (0) target = $region29
    $region28: #{backbone_forward.3} parent=1 // pred_region
      _
    $region29: #{backbone_forward.3} parent=1 // pred_fallthru
      _
    %p28 = scmp.eq.s32.totalorder 0, 0
    // Predicated region
    $region30: #{backbone_forward.3} parent=1 // pred_check
      %p29 = pneg %p28
    $region31: #{backbone_forward.3} parent=1 // pred_check_branch
      %31 = sbr.rel (%p29) target = $region33
    $region32: #{backbone_forward.3} parent=1 // pred_region
      %32 = vst [vmem:[#allocation2] sm:$0x3] 0.0
    $region33: #{backbone_forward.3} parent=1 // pred_fallthru
      _
    %v33 = vld [vmem:[%s0] sm:$0x1]
    %v34 = vld [vmem:[%s1] sm:$0xf]
    %v35 = vld [vmem:[%s1 + $0x4] sm:$0xf]
    %v36 = vld [vmem:[%s1 + $0x8] sm:$0xf]
    %v37 = vld [vmem:[%s1 + $0xc] sm:$0xf]
    %v38 = vld [vmem:[%s1 + $0x10] sm:$0xf]
    %v39 = vld [vmem:[%s1 + $0x14] sm:$0xf]
    %v40 = vld [vmem:[%s1 + $0x18] sm:$0xf]
    %v41 = vld [vmem:[%s1 + $0x1c] sm:$0xf]
    %v42 = vld [vmem:[%s1 + $0x20] sm:$0xf]
    %v43 = vld [vmem:[%s1 + $0x24] sm:$0xf]
    %v44 = vld [vmem:[%s1 + $0x28] sm:$0xf]
    %v45 = vld [vmem:[%s1 + $0x2c] sm:$0xf]
    %v46 = vld [vmem:[%s1 + $0x30] sm:$0xf]
    %v47 = vld [vmem:[%s1 + $0x34] sm:$0xf]
    %v48 = vld [vmem:[%s1 + $0x38] sm:$0xf]
    %v49 = vld [vmem:[%s1 + $0x3c] sm:$0xf]
    %v50 = vld [vmem:[%s2] sm:$0x1]
    %v52 = vlaneseq
    %v53 = vshrl.u32 %v52, 7
    %v54 = vsub.s32 0, %v53
    %v55 = vrot.slane %v50, %v54
    %v73 = vunpack.c.l.b16 %v34
    %v74 = vunpack.c.l.b16 %v35
    %v75 = vunpack.c.l.b16 %v36
    %v76 = vunpack.c.l.b16 %v37
    %v77 = vunpack.c.l.b16 %v38
    %v78 = vunpack.c.l.b16 %v39
    %v79 = vunpack.c.l.b16 %v40
    %v80 = vunpack.c.l.b16 %v41
    %v81 = vunpack.c.l.b16 %v42
    %v82 = vunpack.c.l.b16 %v43
    %v83 = vunpack.c.l.b16 %v44
    %v84 = vunpack.c.l.b16 %v45
    %v85 = vunpack.c.l.b16 %v46
    %v86 = vunpack.c.l.b16 %v47
    %v87 = vunpack.c.l.b16 %v48
    %v88 = vunpack.c.l.b16 %v49
    %v89 = vpack.c.b16 %v74, %v73
    %v90 = vpack.c.b16 %v76, %v75
    %v91 = vpack.c.b16 %v78, %v77
    %v92 = vpack.c.b16 %v80, %v79
    %v93 = vpack.c.b16 %v82, %v81
    %v94 = vpack.c.b16 %v84, %v83
    %v95 = vpack.c.b16 %v86, %v85
    %v96 = vpack.c.b16 %v88, %v87
    %105 = vmatprep.subr.bf16.mxu0 0
    %106 = vmatpush1.bf16.msra.mxu0 %v89
    %107 = vmatprep.subr.bf16.mxu0 0
    %108 = vmatpush1.bf16.msra.mxu0 %v90
    %109 = vmatprep.subr.bf16.mxu0 0
    %110 = vmatpush1.bf16.msra.mxu0 %v91
    %111 = vmatprep.subr.bf16.mxu0 0
    %112 = vmatpush1.bf16.msra.mxu0 %v92
    %113 = vmatprep.subr.bf16.mxu0 0
    %114 = vmatpush1.bf16.msra.mxu0 %v93
    %115 = vmatprep.subr.bf16.mxu0 0
    %116 = vmatpush1.bf16.msra.mxu0 %v94
    %117 = vmatprep.subr.bf16.mxu0 0
    %118 = vmatpush1.bf16.msra.mxu0 %v95
    %119 = vmatprep.subr.bf16.mxu0 0
    %120 = vmatpush1.bf16.msra.mxu0 %v96
    %121 = vmatprep.subr.bf16.mxu0 0
    %122 = vmatpush1.bf16.msra.mxu0 0
    %123 = vmatprep.subr.bf16.mxu0 0
    %124 = vmatpush1.bf16.msra.mxu0 0
    %125 = vmatprep.subr.bf16.mxu0 0
    %126 = vmatpush1.bf16.msra.mxu0 0
    %127 = vmatprep.subr.bf16.mxu0 0
    %128 = vmatpush1.bf16.msra.mxu0 0
    %129 = vmatprep.subr.bf16.mxu0 0
    %130 = vmatpush1.bf16.msra.mxu0 0
    %131 = vmatprep.subr.bf16.mxu0 0
    %132 = vmatpush1.bf16.msra.mxu0 0
    %133 = vmatprep.subr.bf16.mxu0 0
    %134 = vmatpush1.bf16.msra.mxu0 0
    %135 = vmatprep.subr.bf16.mxu0 0
    %136 = vmatpush1.bf16.msra.mxu0 0
    %137 = vmatprep.mubr.bf16.mxu0 0
    %138 = vmatmul.mubr.bf16.gmra.mrb[0].mxu0 %v33
    %v139 = vpop.f32.mrb[0].mxu0
    %v140 = vadd.f32 %v55, %v139
    %v141 = vpop.f32.mrb[0].mxu0
    %v142 = vpop.f32.mrb[0].mxu0
    %v143 = vpop.f32.mrb[0].mxu0
    %144 = vdwg.mxu0
    %vm145 = vcmask 1041408
    %v146 = vsel %vm145, %v140, 0.0
    %v147 = vrot.slane %v146, 4
    %v148 = vadd.f32 %v146, %v147
    %v149 = vrot.slane %v148, 2
    %v150 = vadd.f32 %v148, %v149
    %v151 = vrot.slane %v150, 1
    %v152 = vadd.f32 %v150, %v151
    %v153 = vrcp.pop 2.0
    %v154 = vmul.f32 %v152, %v153
    %v155 = vsub.f32 %v140, %v154
    %v156 = vmul.f32 %v155, %v155
    %v157 = vsel %vm145, %v156, 0.0
    %v158 = vrot.slane %v157, 4
    %v159 = vadd.f32 %v157, %v158
    %v160 = vrot.slane %v159, 2
    %v161 = vadd.f32 %v159, %v160
    %v162 = vrot.slane %v161, 1
    %v163 = vadd.f32 %v161, %v162
    %v164 = vmul.f32 %v163, %v153
    %v165 = vadd.f32 %v164, 1e-05
    %v166 = vrsqrt.pop %v165
    %v167 = vmul.f32 %v155, %v166
    %v168 = vld [vmem:[%s3] sm:$0x1]
    %v170 = vlaneseq
    %v171 = vshrl.u32 %v170, 7
    %v172 = vsub.s32 0, %v171
    %v173 = vrot.slane %v168, %v172
    %v175 = vmul.f32 %v167, %v173
    %v176 = vld [vmem:[%s4] sm:$0x1]
    %v178 = vlaneseq
    %v179 = vshrl.u32 %v178, 7
    %v180 = vsub.s32 0, %v179
    %v181 = vrot.slane %v176, %v180
    %v183 = vadd.f32 %v175, %v181
    %v184 = vmax.f32 %v183, 0.0
    %v185 = vld [vmem:[#allocation2] sm:$0x3]
    %v186 = vpack.c.bf16 %v184, %v184
    %v187 = vld [vmem:[%s5] sm:$0xf]
    %v188 = vld [vmem:[%s5 + $0x4] sm:$0xf]
    %v189 = vld [vmem:[%s5 + $0x8] sm:$0xf]
    %v190 = vld [vmem:[%s5 + $0xc] sm:$0xf]
    %v191 = vld [vmem:[%s5 + $0x10] sm:$0xf]
    %v192 = vld [vmem:[%s5 + $0x14] sm:$0xf]
    %v193 = vld [vmem:[%s5 + $0x18] sm:$0xf]
    %v194 = vld [vmem:[%s5 + $0x1c] sm:$0xf]
    %v195 = vld [vmem:[%s5 + $0x20] sm:$0xf]
    %v196 = vld [vmem:[%s5 + $0x24] sm:$0xf]
    %v197 = vld [vmem:[%s5 + $0x28] sm:$0xf]
    %v198 = vld [vmem:[%s5 + $0x2c] sm:$0xf]
    %v199 = vld [vmem:[%s5 + $0x30] sm:$0xf]
    %v200 = vld [vmem:[%s5 + $0x34] sm:$0xf]
    %v201 = vld [vmem:[%s5 + $0x38] sm:$0xf]
    %v202 = vld [vmem:[%s5 + $0x3c] sm:$0xf]
    %v219 = vunpack.c.l.b16 %v187
    %v220 = vunpack.c.l.b16 %v188
    %v221 = vunpack.c.l.b16 %v189
    %v222 = vunpack.c.l.b16 %v190
    %v223 = vunpack.c.l.b16 %v191
    %v224 = vunpack.c.l.b16 %v192
    %v225 = vunpack.c.l.b16 %v193
    %v226 = vunpack.c.l.b16 %v194
    %v227 = vunpack.c.l.b16 %v195
    %v228 = vunpack.c.l.b16 %v196
    %v229 = vunpack.c.l.b16 %v197
    %v230 = vunpack.c.l.b16 %v198
    %v231 = vunpack.c.l.b16 %v199
    %v232 = vunpack.c.l.b16 %v200
    %v233 = vunpack.c.l.b16 %v201
    %v234 = vunpack.c.l.b16 %v202
    %v235 = vpack.c.b16 %v220, %v219
    %v236 = vpack.c.b16 %v222, %v221
    %v237 = vpack.c.b16 %v224, %v223
    %v238 = vpack.c.b16 %v226, %v225
    %v239 = vpack.c.b16 %v228, %v227
    %v240 = vpack.c.b16 %v230, %v229
    %v241 = vpack.c.b16 %v232, %v231
    %v242 = vpack.c.b16 %v234, %v233
    %251 = vmatprep.subr.bf16.mxu0 0
    %252 = vmatpush1.bf16.msra.mxu0 %v235
    %253 = vmatprep.subr.bf16.mxu0 0
    %254 = vmatpush1.bf16.msra.mxu0 %v236
    %255 = vmatprep.subr.bf16.mxu0 0
    %256 = vmatpush1.bf16.msra.mxu0 %v237
    %257 = vmatprep.subr.bf16.mxu0 0
    %258 = vmatpush1.bf16.msra.mxu0 %v238
    %259 = vmatprep.subr.bf16.mxu0 0
    %260 = vmatpush1.bf16.msra.mxu0 %v239
    %261 = vmatprep.subr.bf16.mxu0 0
    %262 = vmatpush1.bf16.msra.mxu0 %v240
    %263 = vmatprep.subr.bf16.mxu0 0
    %264 = vmatpush1.bf16.msra.mxu0 %v241
    %265 = vmatprep.subr.bf16.mxu0 0
    %266 = vmatpush1.bf16.msra.mxu0 %v242
    %267 = vmatprep.subr.bf16.mxu0 0
    %268 = vmatpush1.bf16.msra.mxu0 0
    %269 = vmatprep.subr.bf16.mxu0 0
    %270 = vmatpush1.bf16.msra.mxu0 0
    %271 = vmatprep.subr.bf16.mxu0 0
    %272 = vmatpush1.bf16.msra.mxu0 0
    %273 = vmatprep.subr.bf16.mxu0 0
    %274 = vmatpush1.bf16.msra.mxu0 0
    %275 = vmatprep.subr.bf16.mxu0 0
    %276 = vmatpush1.bf16.msra.mxu0 0
    %277 = vmatprep.subr.bf16.mxu0 0
    %278 = vmatpush1.bf16.msra.mxu0 0
    %279 = vmatprep.subr.bf16.mxu0 0
    %280 = vmatpush1.bf16.msra.mxu0 0
    %281 = vmatprep.subr.bf16.mxu0 0
    %282 = vmatpush1.bf16.msra.mxu0 0
    %283 = vmatprep.mubr.bf16.mxu0 0
    %284 = vmatmul.mubr.bf16.gmra.mrb[0].mxu0 %v186
    %v285 = vpop.f32.mrb[0].mxu0
    %v286 = vadd.f32 0.0, %v285
    %v287 = vpop.f32.mrb[0].mxu0
    %v288 = vpop.f32.mrb[0].mxu0
    %v289 = vpop.f32.mrb[0].mxu0
    %290 = vdwg.mxu0
    %v291 = vadd.f32 %v185, %v286
    %292 = vst [vmem:[#allocation2] sm:$0x3] %v291
    // Predicated region
    $region34: #{backbone_forward.3} parent=1 // pred_check
      %p293 = pneg %p28
    $region35: #{backbone_forward.3} parent=1 // pred_check_branch
      %295 = sbr.rel (%p293) target = $region37
    $region36: #{backbone_forward.3} parent=1 // pred_region
      %v296 = vld [vmem:[#allocation2] sm:$0x3]
      %v297 = vld [vmem:[%s6] sm:$0x1]
      %v299 = vlaneseq
      %v300 = vshrl.u32 %v299, 7
      %v301 = vsub.s32 0, %v300
      %v302 = vrot.slane %v297, %v301
      %v304 = vadd.f32 %v296, %v302
      %305 = vst [vmem:[#allocation3] sm:$0x3] %v304
    $region37: #{backbone_forward.3} parent=1 // pred_fallthru
      _
    // Predicated region
    $region38: #{backbone_forward.3} parent=1 // pred_check
      _
    $region39: #{backbone_forward.3} parent=1 // pred_check_branch
      %307 = sbr.rel (0) target = $region41
    $region40: #{backbone_forward.3} parent=1 // pred_region
      %s309 = ssub.s32 32, 32
      %310 = vsyncadd [#allocation4], %s309
      %s312 = sshll.u32 [#allocation3], 4
      %s313 = int_to_ptr.vmem [resolvable:$true] %s312
      %315 = dma.vmem_to_hbm [thread:$0]  %s313, 32, %s7, [#allocation4]
    $region41: #{backbone_forward.3} parent=1 // pred_fallthru
      _
    // Predicated region
    $region42: #{backbone_forward.3} parent=1 // pred_check
      _
    $region43: #{backbone_forward.3} parent=1 // pred_check_branch
      %317 = sbr.rel (0) target = $region45
    $region44: #{backbone_forward.3} parent=1 // pred_region
      %318 = dma.done [#allocation4], 32
    $region45: #{backbone_forward.3} parent=1 // pred_fallthru
      _
    %319 = vsyncpa [#allocation4], 1

</llo_original>
